<compile_context>
chip_gen: v6e
topology: v6e:2x2x1
jax: 0.10.0
libtpu: 0.0.40
codegen_flags: <defaults>
</compile_context>

<pallas_src>
import functools

import jax
import jax.numpy as jnp
from jax import lax
from jax.experimental import pallas as pl
from jax.experimental.pallas import tpu as pltpu


# ---------------------------------------------------------------------------
# Generation-aware VMEM budgets (derived from one number).
# ---------------------------------------------------------------------------
def _vmem_capacity_bytes():
    try:
        return int(pltpu.get_tpu_info().vmem_capacity_bytes)
    except Exception:
        return 64 * 1024 * 1024            # conservative fallback (v7x per-TC)


_VMEM_CAP_BYTES = _vmem_capacity_bytes()
_VMEM_LIMIT_BYTES = int(_VMEM_CAP_BYTES * 0.85)                  # scoped limit
_FUSED_A_BUDGET_BYTES = max(_VMEM_LIMIT_BYTES - (6 << 20), 8 << 20)  # headroom
_CARRY_MAX_D = 2048      # iterate carried in vregs up to here; scratch beyond


# ---------------------------------------------------------------------------
# Kernel 1a: fused multi-step update, iterate carried in vregs (small D).
# ---------------------------------------------------------------------------
def fused_steps_carry_kernel(num_steps, scale_ref, x_ref, a_ref, b_ref,
                             out_ref):
    """num_steps iterations of  x <- x + scale * (x @ A - b); x lives in vregs."""
    # Hoist loop-invariants: JAX does not CSE broadcast_in_dim, so the scalar
    # broadcast (and scale*b) would otherwise be re-materialized every step.
    scale_vec = jnp.full(b_ref.shape, scale_ref[0], dtype=jnp.float32)
    sb = scale_vec * b_ref[...]                      # scale * b, computed once

    def body(_, x):
        xa = jnp.dot(x.astype(a_ref.dtype), a_ref[...],         # MXU, bf16 in
                     preferred_element_type=jnp.float32)
        return x + scale_vec * xa - sb               # VPU

    # num_steps is static (functools.partial) -> fully unrolled for the LLO
    # scheduler; each step is a tiny GEMV with a serial dependence.
    x_fin = lax.fori_loop(0, num_steps, body, x_ref[...], unroll=True)
    out_ref[...] = x_fin.astype(out_ref.dtype)


# ---------------------------------------------------------------------------
# Kernel 1b: fused multi-step update, iterate in VMEM scratch (large D).
# ---------------------------------------------------------------------------
def fused_steps_scratch_kernel(num_steps, scale_ref, x_ref, a_ref, b_ref,
                               out_ref, x_scratch):
    """Same update; (1, D) iterate kept in VMEM so it does not spill vregs."""
    x_scratch[...] = x_ref[...]
    scale = scale_ref[0]

    def body(_, carry):
        x = x_scratch[...]
        grad = jnp.dot(x.astype(a_ref.dtype), a_ref[...],
                       preferred_element_type=jnp.float32) - b_ref[...]
        x_scratch[...] = x + scale * grad
        return carry

    lax.fori_loop(0, num_steps, body, 0)
    out_ref[...] = x_scratch[...].astype(out_ref.dtype)


def _fused_forward(scale, x, A, b, num_steps, use_carry=None):
    D = x.shape[-1]
    if use_carry is None:
        use_carry = D <= _CARRY_MAX_D
    if use_carry:
        kernel = functools.partial(fused_steps_carry_kernel, num_steps)
        scratch = []
    else:
        kernel = functools.partial(fused_steps_scratch_kernel, num_steps)
        scratch = [pltpu.VMEM(x.shape, jnp.float32)]

    vmem_spec = pl.BlockSpec(memory_space=pltpu.MemorySpace.VMEM)
    return pl.pallas_call(
        kernel,
        out_shape=jax.ShapeDtypeStruct(x.shape, x.dtype),
        # No grid -> nothing to pipeline -> A is SINGLE-buffered resident VMEM.
        in_specs=[
            pl.BlockSpec(memory_space=pltpu.MemorySpace.SMEM),   # scale (scalar)
            vmem_spec,                                           # x
            vmem_spec,                                           # A (bf16, resident)
            vmem_spec,                                           # b
        ],
        out_specs=vmem_spec,
        scratch_shapes=scratch,
        input_output_aliases={1: 0},                             # donate x -> out
        compiler_params=pltpu.CompilerParams(
            vmem_limit_bytes=_VMEM_LIMIT_BYTES),
    )(scale, x, A, b)


# ---------------------------------------------------------------------------
# Kernel 2: K/N-tiled single step (large D fallback; N axis is "parallel").
# ---------------------------------------------------------------------------
def tiled_step_kernel(scale_ref, xk_ref, a_ref, b_ref, xj_ref, out_ref,
                      acc_ref):
    """grid=(N//tn, K//tk), K last.  acc accumulates x @ A over K chunks."""
    k = pl.program_id(1)

    @pl.when(k == 0)
    def _():
        acc_ref[...] = jnp.zeros_like(acc_ref)

    acc_ref[...] += jnp.dot(xk_ref[...].astype(a_ref.dtype), a_ref[...],
                            preferred_element_type=jnp.float32)

    @pl.when(k == pl.num_programs(1) - 1)
    def _():
        grad = acc_ref[...] - b_ref[...]             # subtract b exactly once
        out_ref[...] = (xj_ref[...] + scale_ref[0] * grad).astype(out_ref.dtype)


def _tiled_forward(scale, x, A, b, tn=None, tk=None):
    D = x.shape[-1]
    if tk is None:
        tk = min(2048, D)                            # big K tiles amortize per-step overhead
    if tn is None:
        tn = min(1024, D)
        # Keep >= 2 N-tiles so both v7x TensorCores get work on the parallel axis.
        if tn == D and D % 256 == 0:
            tn = D // 2
    tn = min(tn, D)
    tk = min(tk, D)
    # TODO(synk): pad/mask instead of asserting for non-divisible D.
    assert D % tn == 0 and D % tk == 0, "D must be divisible by the tile sizes"
    grid = (D // tn, D // tk)                        # (N tiles, K tiles), K last
    return pl.pallas_call(
        tiled_step_kernel,
        out_shape=jax.ShapeDtypeStruct(x.shape, x.dtype),
        grid=grid,
        in_specs=[
            pl.BlockSpec(memory_space=pltpu.MemorySpace.SMEM),   # scale
            pl.BlockSpec((1, tk), lambda j, k: (0, k)),          # x chunk (matmul LHS)
            pl.BlockSpec((tk, tn), lambda j, k: (k, j)),         # A tile (bf16)
            pl.BlockSpec((1, tn), lambda j, k: (0, j)),          # b chunk
            pl.BlockSpec((1, tn), lambda j, k: (0, j)),          # x chunk (elementwise add)
        ],
        out_specs=pl.BlockSpec((1, tn), lambda j, k: (0, j)),
        scratch_shapes=[pltpu.VMEM((1, tn), jnp.float32)],       # accumulator
        compiler_params=pltpu.CompilerParams(
            dimension_semantics=("parallel", "arbitrary"),       # N split across TCs
            vmem_limit_bytes=_VMEM_LIMIT_BYTES),
    )(scale, x, A, b, x)


# ---------------------------------------------------------------------------
# Public wrapper + state glue.
# ---------------------------------------------------------------------------
def dummy_forward(scale, x, A, b, num_steps=1):
    """scale: (1,) f32; x, b: (1, D) f32; A: (D, D) bf16.  Returns (1, D) f32.

    num_steps=1 matches the PyTorch module's forward exactly; num_steps>1 fuses
    the iterative optimizer loop into one launch with A resident in VMEM.
    """
    a_bytes = A.size * jnp.dtype(A.dtype).itemsize
    if a_bytes <= _FUSED_A_BUDGET_BYTES:             # single-buffered residency
        return _fused_forward(scale, x, A, b, num_steps)
    # Large-D fallback: pipelined K/N-tiled single steps (A re-streamed from HBM).
    out = x
    for _ in range(num_steps):
        out = _tiled_forward(scale, out, A, b)
    return out


def update_state(current_iterate):
    # Plain-JAX glue (pure reshape / clone, no compute hot path).
    return current_iterate.reshape((1, -1))


if __name__ == "__main__":
    key = jax.random.PRNGKey(0)
    k1, k2, k3 = jax.random.split(key, 3)

    D = 256                                          # flat iterate dimension
    NUM_STEPS = 32                                   # fused optimizer steps

    x = jax.random.normal(k1, (1, D), dtype=jnp.float32)             # current_iterate
    A = (jax.random.normal(k2, (D, D), dtype=jnp.float32)
         / jnp.sqrt(D)).astype(jnp.bfloat16)                         # Hessian (bf16)
    b = jax.random.normal(k3, (1, D), dtype=jnp.float32)
    # nn.Parameter(torch.tensor(0.001)) -> deterministic scalar parameter.
    scale = jnp.array([0.001], dtype=jnp.float32)

    # Pure-JAX references (same bf16-A / f32-accumulation recipe).
    def ref_step(xc):
        grad = jnp.dot(xc.astype(jnp.bfloat16), A,
                       preferred_element_type=jnp.float32) - b
        return xc + scale[0] * grad

    ref1 = ref_step(x)
    refT = x
    for _ in range(NUM_STEPS):
        refT = ref_step(refT)

    # 1) Single forward step — the original module's semantics (fused, carry path).
    out1 = jax.block_until_ready(dummy_forward(scale, x, A, b, num_steps=1))
    assert out1.shape == (1, D) and out1.dtype == jnp.float32
    assert jnp.allclose(out1, ref1, atol=1e-3, rtol=1e-3)

    # 2) T fused optimizer steps in one launch (A single-buffered in VMEM).
    outT = jax.block_until_ready(dummy_forward(scale, x, A, b,
                                               num_steps=NUM_STEPS))
    assert jnp.allclose(outT, refT, atol=1e-3, rtol=1e-3)

    # 3) Large-D scratch variant of the fused kernel (exercised explicitly).
    outT_s = jax.block_until_ready(_fused_forward(scale, x, A, b,
                                                  num_steps=NUM_STEPS,
                                                  use_carry=False))
    assert jnp.allclose(outT_s, refT, atol=1e-3, rtol=1e-3)

    # 4) K/N-tiled single-step fallback path (auto tile selection + explicit).
    out_tiled = jax.block_until_ready(_tiled_forward(scale, x, A, b))
    assert jnp.allclose(out_tiled, ref1, atol=1e-3, rtol=1e-3)
    out_tiled2 = jax.block_until_ready(_tiled_forward(scale, x, A, b,
                                                      tn=128, tk=128))
    assert jnp.allclose(out_tiled2, ref1, atol=1e-3, rtol=1e-3)

    # update_state path (glue only).
    state = jax.block_until_ready(update_state(out1))
    assert state.shape == (1, D)

    print("KERNEL_OK")
</pallas_src>

<mosaic_0001>
module attributes {stable_mosaic.version = 11 : i64} {
  func.func @fused_steps_carry_kernel(%arg0: memref<1xf32, #tpu.memory_space<smem>>, %arg1: memref<1x256xf32, #tpu.memory_space<vmem>>, %arg2: memref<256x256xbf16, #tpu.memory_space<vmem>>, %arg3: memref<1x256xf32, #tpu.memory_space<vmem>>, %arg4: memref<1x256xf32, #tpu.memory_space<vmem>>) attributes {dimension_semantics = [], scalar_prefetch = 0 : i64, scratch_operands = 0 : i64, tpu.core_type = #tpu.core_type<tc>} {
    %c0 = arith.constant 0 : index
    %0 = memref.load %arg0[%c0] : memref<1xf32, #tpu.memory_space<smem>>
    %1 = vector.broadcast %0 : f32 to vector<1x256xf32>
    %c0_0 = arith.constant 0 : index
    %c0_1 = arith.constant 0 : index
    %2 = vector.load %arg3[%c0_0, %c0_1] : memref<1x256xf32, #tpu.memory_space<vmem>>, vector<1x256xf32>
    %3 = arith.mulf %1, %2 : vector<1x256xf32>
    %c0_2 = arith.constant 0 : index
    %c0_3 = arith.constant 0 : index
    %4 = vector.load %arg1[%c0_2, %c0_3] : memref<1x256xf32, #tpu.memory_space<vmem>>, vector<1x256xf32>
    %c0_i32 = arith.constant 0 : i32
    %5 = arith.truncf %4 : vector<1x256xf32> to vector<1x256xbf16>
    %c0_4 = arith.constant 0 : index
    %c0_5 = arith.constant 0 : index
    %6 = vector.load %arg2[%c0_4, %c0_5] : memref<256x256xbf16, #tpu.memory_space<vmem>>, vector<256x256xbf16>
    %cst = arith.constant dense<0.000000e+00> : vector<1x256xf32>
    %7 = tpu.matmul %5, %6, %cst {dimension_numbers = #tpu.dot_dimension_numbers<[1], [0], [0], [1], [0, 0, 1, 1], [], []>} : vector<1x256xbf16>, vector<256x256xbf16>, vector<1x256xf32> -> vector<1x256xf32>
    %8 = arith.mulf %1, %7 : vector<1x256xf32>
    %9 = arith.addf %4, %8 : vector<1x256xf32>
    %10 = arith.subf %9, %3 : vector<1x256xf32>
    %c0_6 = arith.constant 0 : index
    %c0_7 = arith.constant 0 : index
    %11 = vector.load %arg4[%c0_6, %c0_7] : memref<1x256xf32, #tpu.memory_space<vmem>>, vector<1x256xf32>
    tpu.vector_store %arg4[%c0_6, %c0_7], %10 {strides = array<i32>} : memref<1x256xf32, #tpu.memory_space<vmem>>, vector<1x256xf32>,
    return
  }
}

</mosaic_0001>

<llo_original>
// kernel: tpu_custom_call.1
$region0: #{tpu_custom_call.1}
  #allocation0 [shape = 'u32[]', space=smem, size = 0x4, offset = 0x4, fixed_abs, tag = 'smem constant byte address 0x4 - core index']
  #allocation1 [shape = 'u32[144,128]{1,0:T(1,128)}', space=vmem, size = 0x12000, scoped, tag = 'internal scratch']
  #allocation2 [shape = 'f32[1]{0:T(128)S(6)}', space=smem, size = 0x200, scoped, tag = 'scoped memory for tpu_custom_call.1']
  %s0 = inlined_call_operand.<no memory space> [shape: f32[1], index: 0, kind: input, shape index: {}]
  %s1 = inlined_call_operand.hbm [shape: f32[1,256], index: 1, kind: input, shape index: {}, may-alias: {1,4}]
  %s2 = inlined_call_operand.hbm [shape: bf16[256,256], index: 2, kind: input, shape index: {}]
  %s3 = inlined_call_operand.vmem [shape: f32[1,256], index: 3, kind: input, shape index: {}]
  %s4 = inlined_call_operand.hbm [shape: f32[1,256], index: 4, kind: output, shape index: {}, may-alias: {1,4}]
  %s5 = sld [smem:[#allocation0]]
  $region34: #{tpu_custom_call.1} parent=0
    _
  %s7 = ssub.s32 1, %s5
  %s8 = scalar_select 0, %s7, %s5
  %9 = sst [smem:[#allocation2]] %s0
  $region1: #{tpu_custom_call.1} parent=0
    #allocation3 [shape = 'u8[1024]{0}', space=vmem, size = 0x400, scoped, tag = 'input window, operand 1, single buffered']
    #allocation4 [shape = 's32[1]{0}', space=sflag, size = 0x4, scoped, tag = 'scoped memory for tpu_custom_call.1']
    #allocation5 [shape = 's32[1]{0}', space=sflag, size = 0x4, scoped, tag = 'scoped memory for tpu_custom_call.1']
    #allocation6 [shape = 'u8[131072]{0}', space=vmem, size = 0x20000, scoped, tag = 'input window, operand 2, single buffered']
    #allocation7 [shape = 's32[1]{0}', space=sflag, size = 0x4, scoped, tag = 'scoped memory for tpu_custom_call.1']
    #allocation8 [shape = 'u8[1024]{0}', space=vmem, size = 0x400, scoped, tag = 'output window, operand 0, single buffered']
    %10 = vsyncpa [#allocation4], 0
    %11 = vsyncpa [#allocation7], 0
    %12 = vsyncpa [#allocation5], 0
    // Predicated region
    $region2: #{tpu_custom_call.1} parent=1 // pred_check
      _
    $region3: #{tpu_custom_call.1} parent=1 // pred_check_branch
      %14 = sbr.rel (0) target = $region5
    $region4: #{tpu_custom_call.1} parent=1 // pred_region
      _
    $region5: #{tpu_custom_call.1} parent=1 // pred_fallthru
      _
    // Predicated region
    $region6: #{tpu_custom_call.1} parent=1 // pred_check
      _
    $region7: #{tpu_custom_call.1} parent=1 // pred_check_branch
      %16 = sbr.rel (0) target = $region9
    $region8: #{tpu_custom_call.1} parent=1 // pred_region
      %s18 = ssub.s32 32, 32
      %19 = vsyncadd [#allocation4], %s18
      %s21 = sshll.u32 [#allocation3], 4
      %s22 = int_to_ptr.vmem [resolvable:$true] %s21
      %24 = dma.hbm_to_vmem [thread:$0]  %s1, 32, %s22, [#allocation4]
    $region9: #{tpu_custom_call.1} parent=1 // pred_fallthru
      _
    // Predicated region
    $region10: #{tpu_custom_call.1} parent=1 // pred_check
      _
    $region11: #{tpu_custom_call.1} parent=1 // pred_check_branch
      %26 = sbr.rel (0) target = $region13
    $region12: #{tpu_custom_call.1} parent=1 // pred_region
      %s28 = ssub.s32 4096, 4096
      %29 = vsyncadd [#allocation7], %s28
      %s30 = sshll.u32 [#allocation6], 4
      %s31 = int_to_ptr.vmem [resolvable:$true] %s30
      %36 = dma.hbm_to_vmem [thread:$0]  %s2, 4096, %s31, [#allocation7], 128, 128, 8
    $region13: #{tpu_custom_call.1} parent=1 // pred_fallthru
      _
    // Predicated region
    $region14: #{tpu_custom_call.1} parent=1 // pred_check
      _
    $region15: #{tpu_custom_call.1} parent=1 // pred_check_branch
      %38 = sbr.rel (0) target = $region17
    $region16: #{tpu_custom_call.1} parent=1 // pred_region
      _
    $region17: #{tpu_custom_call.1} parent=1 // pred_fallthru
      _
    // Predicated region
    $region18: #{tpu_custom_call.1} parent=1 // pred_check
      _
    $region19: #{tpu_custom_call.1} parent=1 // pred_check_branch
      %40 = sbr.rel (0) target = $region21
    $region20: #{tpu_custom_call.1} parent=1 // pred_region
      %41 = dma.done [#allocation4], 32
    $region21: #{tpu_custom_call.1} parent=1 // pred_fallthru
      _
    // Predicated region
    $region22: #{tpu_custom_call.1} parent=1 // pred_check
      _
    $region23: #{tpu_custom_call.1} parent=1 // pred_check_branch
      %43 = sbr.rel (0) target = $region25
    $region24: #{tpu_custom_call.1} parent=1 // pred_region
      %44 = dma.done [#allocation7], 4096
    $region25: #{tpu_custom_call.1} parent=1 // pred_fallthru
      _
    %s45 = sld [smem:[#allocation2]]
    %v46 = vstv %s45
    %v47 = vld [vmem:[%s3] sm:$0x3]
    %v48 = vmul.f32 %v46, %v47
    %v49 = vld [vmem:[#allocation3] sm:$0x3]
    %v51 = vlaneseq
    %v52 = vshrl.u32 %v51, 7
    %v53 = vsub.s32 0, %v52
    %v54 = vrot.slane %v49, %v53
    %v55 = vlaneseq
    %v56 = vshrl.u32 %v55, 7
    %v57 = vsub.s32 1, %v56
    %v58 = vrot.slane %v49, %v57
    %v61 = vpack.c.bf16 %v54, %v54
    %v62 = vpack.c.bf16 %v58, %v58
    %v63 = vld [vmem:[#allocation6] sm:$0xff]
    %v64 = vld [vmem:[#allocation6 + $0x8] sm:$0xff]
    %v65 = vld [vmem:[#allocation6 + $0x10] sm:$0xff]
    %v66 = vld [vmem:[#allocation6 + $0x18] sm:$0xff]
    %v67 = vld [vmem:[#allocation6 + $0x20] sm:$0xff]
    %v68 = vld [vmem:[#allocation6 + $0x28] sm:$0xff]
    %v69 = vld [vmem:[#allocation6 + $0x30] sm:$0xff]
    %v70 = vld [vmem:[#allocation6 + $0x38] sm:$0xff]
    %v71 = vld [vmem:[#allocation6 + $0x40] sm:$0xff]
    %v72 = vld [vmem:[#allocation6 + $0x48] sm:$0xff]
    %v73 = vld [vmem:[#allocation6 + $0x50] sm:$0xff]
    %v74 = vld [vmem:[#allocation6 + $0x58] sm:$0xff]
    %v75 = vld [vmem:[#allocation6 + $0x60] sm:$0xff]
    %v76 = vld [vmem:[#allocation6 + $0x68] sm:$0xff]
    %v77 = vld [vmem:[#allocation6 + $0x70] sm:$0xff]
    %v78 = vld [vmem:[#allocation6 + $0x78] sm:$0xff]
    %v79 = vld [vmem:[#allocation6 + $0x80] sm:$0xff]
    %v80 = vld [vmem:[#allocation6 + $0x88] sm:$0xff]
    %v81 = vld [vmem:[#allocation6 + $0x90] sm:$0xff]
    %v82 = vld [vmem:[#allocation6 + $0x98] sm:$0xff]
    %v83 = vld [vmem:[#allocation6 + $0xa0] sm:$0xff]
    %v84 = vld [vmem:[#allocation6 + $0xa8] sm:$0xff]
    %v85 = vld [vmem:[#allocation6 + $0xb0] sm:$0xff]
    %v86 = vld [vmem:[#allocation6 + $0xb8] sm:$0xff]
    %v87 = vld [vmem:[#allocation6 + $0xc0] sm:$0xff]
    %v88 = vld [vmem:[#allocation6 + $0xc8] sm:$0xff]
    %v89 = vld [vmem:[#allocation6 + $0xd0] sm:$0xff]
    %v90 = vld [vmem:[#allocation6 + $0xd8] sm:$0xff]
    %v91 = vld [vmem:[#allocation6 + $0xe0] sm:$0xff]
    %v92 = vld [vmem:[#allocation6 + $0xe8] sm:$0xff]
    %v93 = vld [vmem:[#allocation6 + $0xf0] sm:$0xff]
    %v94 = vld [vmem:[#allocation6 + $0xf8] sm:$0xff]
    %v127 = vunpack.c.l.b16 %v63
    %v128 = vunpack.c.h.b16 %v63
    %v129 = vunpack.c.l.b16 %v64
    %v130 = vunpack.c.h.b16 %v64
    %v131 = vunpack.c.l.b16 %v65
    %v132 = vunpack.c.h.b16 %v65
    %v133 = vunpack.c.l.b16 %v66
    %v134 = vunpack.c.h.b16 %v66
    %v135 = vunpack.c.l.b16 %v67
    %v136 = vunpack.c.h.b16 %v67
    %v137 = vunpack.c.l.b16 %v68
    %v138 = vunpack.c.h.b16 %v68
    %v139 = vunpack.c.l.b16 %v69
    %v140 = vunpack.c.h.b16 %v69
    %v141 = vunpack.c.l.b16 %v70
    %v142 = vunpack.c.h.b16 %v70
    %v143 = vunpack.c.l.b16 %v71
    %v144 = vunpack.c.h.b16 %v71
    %v145 = vunpack.c.l.b16 %v72
    %v146 = vunpack.c.h.b16 %v72
    %v147 = vunpack.c.l.b16 %v73
    %v148 = vunpack.c.h.b16 %v73
    %v149 = vunpack.c.l.b16 %v74
    %v150 = vunpack.c.h.b16 %v74
    %v151 = vunpack.c.l.b16 %v75
    %v152 = vunpack.c.h.b16 %v75
    %v153 = vunpack.c.l.b16 %v76
    %v154 = vunpack.c.h.b16 %v76
    %v155 = vunpack.c.l.b16 %v77
    %v156 = vunpack.c.h.b16 %v77
    %v157 = vunpack.c.l.b16 %v78
    %v158 = vunpack.c.h.b16 %v78
    %v159 = vunpack.c.l.b16 %v79
    %v160 = vunpack.c.h.b16 %v79
    %v161 = vunpack.c.l.b16 %v80
    %v162 = vunpack.c.h.b16 %v80
    %v163 = vunpack.c.l.b16 %v81
    %v164 = vunpack.c.h.b16 %v81
    %v165 = vunpack.c.l.b16 %v82
    %v166 = vunpack.c.h.b16 %v82
    %v167 = vunpack.c.l.b16 %v83
    %v168 = vunpack.c.h.b16 %v83
    %v169 = vunpack.c.l.b16 %v84
    %v170 = vunpack.c.h.b16 %v84
    %v171 = vunpack.c.l.b16 %v85
    %v172 = vunpack.c.h.b16 %v85
    %v173 = vunpack.c.l.b16 %v86
    %v174 = vunpack.c.h.b16 %v86
    %v175 = vunpack.c.l.b16 %v87
    %v176 = vunpack.c.h.b16 %v87
    %v177 = vunpack.c.l.b16 %v88
    %v178 = vunpack.c.h.b16 %v88
    %v179 = vunpack.c.l.b16 %v89
    %v180 = vunpack.c.h.b16 %v89
    %v181 = vunpack.c.l.b16 %v90
    %v182 = vunpack.c.h.b16 %v90
    %v183 = vunpack.c.l.b16 %v91
    %v184 = vunpack.c.h.b16 %v91
    %v185 = vunpack.c.l.b16 %v92
    %v186 = vunpack.c.h.b16 %v92
    %v187 = vunpack.c.l.b16 %v93
    %v188 = vunpack.c.h.b16 %v93
    %v189 = vunpack.c.l.b16 %v94
    %v190 = vunpack.c.h.b16 %v94
    %v191 = vpack.c.b16 %v129, %v127
    %v192 = vpack.c.b16 %v130, %v128
    %v193 = vpack.c.b16 %v133, %v131
    %v194 = vpack.c.b16 %v134, %v132
    %v195 = vpack.c.b16 %v137, %v135
    %v196 = vpack.c.b16 %v138, %v136
    %v197 = vpack.c.b16 %v141, %v139
    %v198 = vpack.c.b16 %v142, %v140
    %v199 = vpack.c.b16 %v145, %v143
    %v200 = vpack.c.b16 %v146, %v144
    %v201 = vpack.c.b16 %v149, %v147
    %v202 = vpack.c.b16 %v150, %v148
    %v203 = vpack.c.b16 %v153, %v151
    %v204 = vpack.c.b16 %v154, %v152
    %v205 = vpack.c.b16 %v157, %v155
    %v206 = vpack.c.b16 %v158, %v156
    %v207 = vpack.c.b16 %v161, %v159
    %v208 = vpack.c.b16 %v162, %v160
    %v209 = vpack.c.b16 %v165, %v163
    %v210 = vpack.c.b16 %v166, %v164
    %v211 = vpack.c.b16 %v169, %v167
    %v212 = vpack.c.b16 %v170, %v168
    %v213 = vpack.c.b16 %v173, %v171
    %v214 = vpack.c.b16 %v174, %v172
    %v215 = vpack.c.b16 %v177, %v175
    %v216 = vpack.c.b16 %v178, %v176
    %v217 = vpack.c.b16 %v181, %v179
    %v218 = vpack.c.b16 %v182, %v180
    %v219 = vpack.c.b16 %v185, %v183
    %v220 = vpack.c.b16 %v186, %v184
    %v221 = vpack.c.b16 %v189, %v187
    %v222 = vpack.c.b16 %v190, %v188
    %255 = vmatprep.subr.bf16.mxu0 %v206
    %256 = vmatpush1.bf16.msra.mxu0 %v205
    %257 = vmatprep.subr.bf16.mxu0 %v204
    %258 = vmatpush1.bf16.msra.mxu0 %v203
    %259 = vmatprep.subr.bf16.mxu0 %v202
    %260 = vmatpush1.bf16.msra.mxu0 %v201
    %261 = vmatprep.subr.bf16.mxu0 %v200
    %262 = vmatpush1.bf16.msra.mxu0 %v199
    %263 = vmatprep.subr.bf16.mxu0 %v198
    %264 = vmatpush1.bf16.msra.mxu0 %v197
    %265 = vmatprep.subr.bf16.mxu0 %v196
    %266 = vmatpush1.bf16.msra.mxu0 %v195
    %267 = vmatprep.subr.bf16.mxu0 %v194
    %268 = vmatpush1.bf16.msra.mxu0 %v193
    %269 = vmatprep.subr.bf16.mxu0 %v192
    %270 = vmatpush1.bf16.msra.mxu0 %v191
    %271 = vmatprep.subr.bf16.mxu0 %v222
    %272 = vmatpush2.bf16.msra.mxu0 %v221
    %273 = vmatprep.subr.bf16.mxu0 %v220
    %274 = vmatpush2.bf16.msra.mxu0 %v219
    %275 = vmatprep.subr.bf16.mxu0 %v218
    %276 = vmatpush2.bf16.msra.mxu0 %v217
    %277 = vmatprep.subr.bf16.mxu0 %v216
    %278 = vmatpush2.bf16.msra.mxu0 %v215
    %279 = vmatprep.subr.bf16.mxu0 %v214
    %280 = vmatpush2.bf16.msra.mxu0 %v213
    %281 = vmatprep.subr.bf16.mxu0 %v212
    %282 = vmatpush2.bf16.msra.mxu0 %v211
    %283 = vmatprep.subr.bf16.mxu0 %v210
    %284 = vmatpush2.bf16.msra.mxu0 %v209
    %285 = vmatprep.subr.bf16.mxu0 %v208
    %286 = vmatpush2.bf16.msra.mxu0 %v207
    %287 = vmatprep.mubr.bf16.mxu0 %v62
    %288 = vmatmul.mubr.bf16.gmra.mxu0 %v61
    %v289 = vpop.f32.mrf.mxu0
    %v290 = vadd.f32 0.0, %v289
    %v291 = vpop.f32.mrf.mxu0
    %v292 = vadd.f32 0.0, %v291
    %v293 = vpop.f32.mrf.mxu0
    %v294 = vpop.f32.mrf.mxu0
    %295 = vdwg.mxu0
    %v296 = vmul.f32 %v46, %v290
    %v297 = vmul.f32 %v46, %v292
    %v300 = vcombine.low %v296, %v297
    %v302 = vunpack.c.l.s4 1966171168
    %v303 = vunpack.c.0.s8 %v302
    %v304 = vlaneseq
    %v305 = vshrl.u32 %v304, 7
    %v306 = vsub.s32 %v303, %v305
    %v307 = vrot.slane %v300, %v306
    %v309 = vunpack.c.l.s4 1966171168
    %v310 = vunpack.c.0.s8 %v309
    %v311 = vlaneseq
    %v312 = vshrl.u32 %v311, 7
    %v313 = vsub.s32 %v310, %v312
    %v314 = vrot.slane %v307, %v313
    %v316 = vadd.f32 %v49, %v314
    %v317 = vsub.f32 %v316, %v48
    %v318 = vlaneseq
    %vm319 = vcmp.ge.s32.totalorder %v318, 0
    %vm320 = vcmp.lt.s32.totalorder %v318, 256
    %vm321 = vmand %vm319, %vm320
    %322 = vst.msk [vmem:[#allocation8] sm:$0x3] %vm321, %v317
    // Predicated region
    $region26: #{tpu_custom_call.1} parent=1 // pred_check
      _
    $region27: #{tpu_custom_call.1} parent=1 // pred_check_branch
      %324 = sbr.rel (0) target = $region29
    $region28: #{tpu_custom_call.1} parent=1 // pred_region
      %s326 = ssub.s32 32, 32
      %327 = vsyncadd [#allocation5], %s326
      %s329 = sshll.u32 [#allocation8], 4
      %s330 = int_to_ptr.vmem [resolvable:$true] %s329
      %332 = dma.vmem_to_hbm [thread:$0]  %s330, 32, %s4, [#allocation5]
    $region29: #{tpu_custom_call.1} parent=1 // pred_fallthru
      _
    // Predicated region
    $region30: #{tpu_custom_call.1} parent=1 // pred_check
      _
    $region31: #{tpu_custom_call.1} parent=1 // pred_check_branch
      %334 = sbr.rel (0) target = $region33
    $region32: #{tpu_custom_call.1} parent=1 // pred_region
      %335 = dma.done [#allocation5], 32
    $region33: #{tpu_custom_call.1} parent=1 // pred_fallthru
      _
    %336 = vsyncpa [#allocation4], 1
    %337 = vsyncpa [#allocation7], 1
    %338 = vsyncpa [#allocation5], 1

</llo_original>
